<compile_context>
chip_gen: v6e
topology: v6e:2x2x1
jax: 0.10.0
libtpu: 0.0.40
codegen_flags: <defaults>
</compile_context>

<pallas_src>
import functools

import jax
import jax.numpy as jnp
from jax.experimental import pallas as pl
from jax.experimental.pallas import tpu as pltpu


_LANE = 128
_MIB = 1024 * 1024
_MAX_TM = 2048


def _round_up(x, m):
    return ((x + m - 1) // m) * m


@functools.lru_cache(maxsize=1)
def _tpu_config():
    """Return (physical VMEM bytes per core, TensorCores per chip).

    Uses pltpu.get_tpu_info() when available; falls back to conservative
    (v7x-safe) defaults on any failure.
    """
    vmem = None
    cores = None
    try:
        info = pltpu.get_tpu_info()
        for name in ("vmem_capacity_bytes", "vmem_bytes", "vmem_size_bytes"):
            v = getattr(info, name, None)
            if v:
                vmem = int(v)
                break
        for name in ("num_cores", "core_count", "tensorcore_count", "num_tensorcores"):
            v = getattr(info, name, None)
            if v:
                cores = int(v)
                break
    except Exception:
        pass
    if vmem is None:
        vmem = 64 * _MIB                 # conservative: v7x per-TC VMEM
    if cores is None:
        # Heuristic: 64 MiB-per-core chips (v7x) have 2 TensorCores per chip;
        # 128 MiB chips (v5e/v6e) have 1.
        cores = 2 if vmem <= 64 * _MIB else 1
    return int(vmem), max(1, int(cores))


def _patch_embed_kernel(x_ref, w_ref, b_ref, o_ref):
    # x_ref: (tm, K)   w_ref: (K, E)   b_ref: (1, E) f32   o_ref: (tm, E)
    acc = jnp.dot(x_ref[...], w_ref[...], preferred_element_type=jnp.float32)
    # bias add + cast kept in f32 (v5e VPU has no bf16 elementwise path)
    o_ref[...] = (acc + b_ref[...]).astype(o_ref.dtype)


def patch_embed_1d(x, weight, bias, patch_length, flatten=True):
    """Forward of PatchEmbed_1D.

    x: (B, C, L) signal; weight: (E, C, P) conv kernel; bias: (E,).
    Returns (B, num_patches, E) if flatten else (B, E, num_patches).
    """
    B, C, L = x.shape
    E, Cw, P = weight.shape
    assert Cw == C and P == patch_length
    assert L % patch_length == 0, "signal length does not match."
    num_patches = L // patch_length

    # ---- activations: row-major patch matrix (M, K), K = C * P --------------
    if C == 1:
        # module default (in_chans=1): contiguous reshape, no HBM copy
        xp = x.reshape(B * num_patches, patch_length)
    else:
        # TODO(synk): fuse this (c, k) interleave into the kernel (treat C as a
        # reduction grid axis over x's native layout) to drop one full HBM pass
        # over the activation on the C > 1 path.
        xp = jnp.transpose(
            x.reshape(B, C, num_patches, patch_length), (0, 2, 1, 3)
        ).reshape(B * num_patches, C * patch_length)

    M, K = xp.shape

    # Weight / bias: tiny trace-time reshapes.  E is left unpadded: the output
    # block is full-extent in E, so small embed dims avoid the pad+slice round
    # trip, and 128-multiple embed dims get lane-dense stores automatically.
    w = weight.reshape(E, K).T.astype(x.dtype)        # (K, E)
    b = bias.astype(jnp.float32).reshape(1, E)        # f32 epilogue

    # ---- per-generation VMEM budget ------------------------------------------
    phys_vmem, num_cores = _tpu_config()
    if phys_vmem >= 96 * _MIB:                        # v5e / v6e: 128 MiB VMEM
        vmem_budget, vmem_limit = 56 * _MIB, 64 * _MIB
    else:                                             # v7x (64 MiB) or unknown
        vmem_budget, vmem_limit = 24 * _MIB, 32 * _MIB

    # ---- tile selection ------------------------------------------------------
    xb = jnp.dtype(x.dtype).itemsize
    # sublane packing: 8 rows (f32), 16 (bf16), 32 (8-bit)
    mult = {4: 8, 2: 16, 1: 32}.get(xb, 8)
    Kp = _round_up(K, _LANE)                          # lane-padded VMEM widths
    Ep = _round_up(E, _LANE)

    def vmem_need(tm_):
        # double-buffered x tile + resident weight (counted double-buffered,
        # conservative) + 8-sublane f32 bias row + double-buffered out tile,
        # all at their lane-padded in-VMEM sizes.
        return (2 * tm_ * Kp * xb
                + 2 * Kp * Ep * xb
                + 2 * 8 * Ep * 4
                + 2 * tm_ * Ep * xb)

    if M <= mult:
        tm = M                                        # single full-extent block
    else:
        # Biggest tile first: amortizes the ~0.35 us per-grid-step overhead and
        # keeps the (memory-bound) pipeline near the HBM roofline.
        tm = min(_MAX_TM, _round_up(M, mult))
        if num_cores > 1 and M > mult * num_cores:
            # v7x megacore: >= num_cores balanced blocks (one per TensorCore).
            # Single-TC chips skip this — their grid is just a serial loop.
            n_blocks = num_cores * pl.cdiv(M, num_cores * _MAX_TM)
            tm = min(tm, _round_up(pl.cdiv(M, n_blocks), mult))
        while tm > mult and vmem_need(tm) > vmem_budget:
            tm = max(mult, _round_up(tm // 2, mult))

    grid = (pl.cdiv(M, tm),)   # ragged last block handled by Pallas store masking

    cost = pl.CostEstimate(
        flops=2 * M * K * E,
        transcendentals=0,
        bytes_accessed=M * K * xb + K * E * xb + E * 4 + M * E * xb,
    )

    out = pl.pallas_call(
        _patch_embed_kernel,
        out_shape=jax.ShapeDtypeStruct((M, E), x.dtype),
        grid_spec=pltpu.PrefetchScalarGridSpec(
            num_scalar_prefetch=0,
            grid=grid,
            in_specs=[
                pl.BlockSpec((tm, K), lambda i: (i, 0)),   # patch rows, tiled over M
                pl.BlockSpec((K, E), lambda i: (0, 0)),    # weight, fetched once
                pl.BlockSpec((1, E), lambda i: (0, 0)),    # bias row, fetched once
            ],
            out_specs=pl.BlockSpec((tm, E), lambda i: (i, 0)),
        ),
        compiler_params=pltpu.CompilerParams(
            dimension_semantics=("parallel",),
            vmem_limit_bytes=vmem_limit,
        ),
        cost_estimate=cost,
    )(xp, w, b)

    out = out.reshape(B, num_patches, E)
    if not flatten:
        # TODO(synk): emit the kernel output directly as (E, M) tiles for the
        # flatten=False layout instead of this extra XLA transpose pass.
        out = jnp.transpose(out, (0, 2, 1))   # raw conv layout (B, E, num_patches)
    # norm_layer=None -> nn.Identity(): nothing to do.
    return out


def _ref_forward(x, weight, bias, P, flatten=True):
    """Pure-JAX reference of the PyTorch forward (strided conv == patch matmul)."""
    B, C, L = x.shape
    E = weight.shape[0]
    n = L // P
    xp = jnp.transpose(x.reshape(B, C, n, P), (0, 2, 1, 3)).reshape(B, n, C * P)
    out = xp @ weight.reshape(E, C * P).T + bias[None, None, :]
    if not flatten:
        out = jnp.transpose(out, (0, 2, 1))
    return out


if __name__ == "__main__":
    key = jax.random.PRNGKey(0)

    # Case 1: module defaults scaled down (in_chans=1, embed_dim == patch_length)
    B, C, L, P, E = 2, 1, 160, 40, 40
    k1, k2, k3, key = jax.random.split(key, 4)
    x = jax.random.normal(k1, (B, C, L), dtype=jnp.float32)
    w = jax.random.normal(k2, (E, C, P), dtype=jnp.float32) * 0.02
    b = jax.random.normal(k3, (E,), dtype=jnp.float32) * 0.02
    out = jax.block_until_ready(patch_embed_1d(x, w, b, P, flatten=True))
    ref = _ref_forward(x, w, b, P, flatten=True)
    assert out.shape == (B, L // P, E)
    assert jnp.allclose(out, ref, atol=1e-5, rtol=1e-5)

    # Case 2: multi-channel input, different embed dim (exercises the C > 1 path)
    B, C, L, P, E = 2, 3, 128, 16, 48
    k1, k2, k3, key = jax.random.split(key, 4)
    x = jax.random.normal(k1, (B, C, L), dtype=jnp.float32)
    w = jax.random.normal(k2, (E, C, P), dtype=jnp.float32) * 0.02
    b = jax.random.normal(k3, (E,), dtype=jnp.float32) * 0.02
    out = jax.block_until_ready(patch_embed_1d(x, w, b, P, flatten=True))
    ref = _ref_forward(x, w, b, P, flatten=True)
    assert out.shape == (B, L // P, E)
    assert jnp.allclose(out, ref, atol=1e-5, rtol=1e-5)

    # Case 3: module-default geometry (sig_length=2400, patch_length=40,
    # embed_dim=40) at batch 4 -> exercises the multi-block grid / ragged path,
    # plus the flatten=False branch.
    B, C, L, P, E = 4, 1, 2400, 40, 40
    k1, k2, k3, key = jax.random.split(key, 4)
    x = jax.random.normal(k1, (B, C, L), dtype=jnp.float32)
    w = jax.random.normal(k2, (E, C, P), dtype=jnp.float32) * 0.02
    b = jax.random.normal(k3, (E,), dtype=jnp.float32) * 0.02
    out = jax.block_until_ready(patch_embed_1d(x, w, b, P, flatten=True))
    ref = _ref_forward(x, w, b, P, flatten=True)
    assert out.shape == (B, L // P, E)
    assert jnp.allclose(out, ref, atol=1e-5, rtol=1e-5)

    out_nf = jax.block_until_ready(patch_embed_1d(x, w, b, P, flatten=False))
    ref_nf = _ref_forward(x, w, b, P, flatten=False)
    assert out_nf.shape == (B, E, L // P)
    assert jnp.allclose(out_nf, ref_nf, atol=1e-5, rtol=1e-5)

    print("KERNEL_OK")
</pallas_src>

<mosaic_0001>
module attributes {stable_mosaic.version = 11 : i64} {
  func.func @_patch_embed_kernel(%arg0: i32, %arg1: memref<8x40xf32, #tpu.memory_space<vmem>>, %arg2: memref<40x40xf32, #tpu.memory_space<vmem>>, %arg3: memref<1x40xf32, #tpu.memory_space<vmem>>, %arg4: memref<8x40xf32, #tpu.memory_space<vmem>>) attributes {dimension_semantics = [#tpu.dimension_semantics<parallel>], iteration_bounds = array<i64: 1>, scalar_prefetch = 0 : i64, scratch_operands = 0 : i64, tpu.core_type = #tpu.core_type<tc>, window_params = [{transform_indices = @transform_0, window_bounds = array<i64: 8, 40>}, {pipeline_mode = #tpu.pipeline_mode<synchronous>, transform_indices = @transform_1, window_bounds = array<i64: 40, 40>}, {pipeline_mode = #tpu.pipeline_mode<synchronous>, transform_indices = @transform_2, window_bounds = array<i64: 1, 40>}, {transform_indices = @transform_3, window_bounds = array<i64: 8, 40>}]} {
    %c0 = arith.constant 0 : index
    %c0_0 = arith.constant 0 : index
    %0 = vector.load %arg1[%c0, %c0_0] : memref<8x40xf32, #tpu.memory_space<vmem>>, vector<8x40xf32>
    %c0_1 = arith.constant 0 : index
    %c0_2 = arith.constant 0 : index
    %1 = vector.load %arg2[%c0_1, %c0_2] : memref<40x40xf32, #tpu.memory_space<vmem>>, vector<40x40xf32>
    %cst = arith.constant dense<0.000000e+00> : vector<8x40xf32>
    %2 = tpu.matmul %0, %1, %cst {dimension_numbers = #tpu.dot_dimension_numbers<[1], [0], [0], [1], [0, 0, 1, 1], [], []>} : vector<8x40xf32>, vector<40x40xf32>, vector<8x40xf32> -> vector<8x40xf32>
    %c0_3 = arith.constant 0 : index
    %c0_4 = arith.constant 0 : index
    %3 = vector.load %arg3[%c0_3, %c0_4] : memref<1x40xf32, #tpu.memory_space<vmem>>, vector<1x40xf32>
    %4 = vector.broadcast %3 : vector<1x40xf32> to vector<8x40xf32>
    %5 = arith.addf %2, %4 : vector<8x40xf32>
    %c0_5 = arith.constant 0 : index
    %c0_6 = arith.constant 0 : index
    %6 = vector.load %arg4[%c0_5, %c0_6] : memref<8x40xf32, #tpu.memory_space<vmem>>, vector<8x40xf32>
    tpu.vector_store %arg4[%c0_5, %c0_6], %5 {strides = array<i32>} : memref<8x40xf32, #tpu.memory_space<vmem>>, vector<8x40xf32>,
    return
  }
  func.func @transform_0(%arg0: i32) -> (i32, i32) {
    %c0_i32 = arith.constant 0 : i32
    %c0_i32_0 = arith.constant 0 : i32
    return %arg0, %c0_i32 : i32, i32
  }
  func.func @transform_1(%arg0: i32) -> (i32, i32) {
    %c0_i32 = arith.constant 0 : i32
    %c0_i32_0 = arith.constant 0 : i32
    %c0_i32_1 = arith.constant 0 : i32
    return %c0_i32, %c0_i32_0 : i32, i32
  }
  func.func @transform_2(%arg0: i32) -> (i32, i32) {
    %c0_i32 = arith.constant 0 : i32
    %c0_i32_0 = arith.constant 0 : i32
    %c0_i32_1 = arith.constant 0 : i32
    return %c0_i32, %c0_i32_0 : i32, i32
  }
  func.func @transform_3(%arg0: i32) -> (i32, i32) {
    %c0_i32 = arith.constant 0 : i32
    %c0_i32_0 = arith.constant 0 : i32
    return %arg0, %c0_i32 : i32, i32
  }
}

</mosaic_0001>

<llo_original>
// kernel: tpu_custom_call.1
$region0: #{tpu_custom_call.1}
  #allocation0 [shape = 'u32[]', space=smem, size = 0x4, offset = 0x4, fixed_abs, tag = 'smem constant byte address 0x4 - core index']
  #allocation1 [shape = 'u32[144,128]{1,0:T(1,128)}', space=vmem, size = 0x12000, scoped, tag = 'internal scratch']
  %s0 = inlined_call_operand.hbm [shape: f32[8,40], index: 0, kind: input, shape index: {}]
  %s1 = inlined_call_operand.hbm [shape: f32[40,40], index: 1, kind: input, shape index: {}]
  %s2 = inlined_call_operand.vmem [shape: f32[1,40], index: 2, kind: input, shape index: {}]
  %s3 = inlined_call_operand.hbm [shape: f32[8,40], index: 3, kind: output, shape index: {}]
  %s4 = sld [smem:[#allocation0]]
  $region30: #{tpu_custom_call.1} parent=0
    _
  %s6 = ssub.s32 1, %s4
  %s7 = scalar_select 0, %s6, %s4
  $region1: #{tpu_custom_call.1} parent=0
    #allocation2 [shape = 'u8[4096]{0}', space=vmem, size = 0x1000, scoped, tag = 'input window, operand 0, single buffered']
    #allocation3 [shape = 's32[1]{0}', space=sflag, size = 0x4, scoped, tag = 'scoped memory for tpu_custom_call.1']
    #allocation4 [shape = 's32[1]{0}', space=sflag, size = 0x4, scoped, tag = 'scoped memory for tpu_custom_call.1']
    #allocation5 [shape = 'u8[20480]{0}', space=vmem, size = 0x5000, scoped, tag = 'input window, operand 1, single buffered']
    #allocation6 [shape = 's32[1]{0}', space=sflag, size = 0x4, scoped, tag = 'scoped memory for tpu_custom_call.1']
    #allocation7 [shape = 'u8[4096]{0}', space=vmem, size = 0x1000, scoped, tag = 'output window, operand 0, single buffered']
    %8 = vsyncpa [#allocation3], 0
    %9 = vsyncpa [#allocation6], 0
    %10 = vsyncpa [#allocation4], 0
    // Predicated region
    $region2: #{tpu_custom_call.1} parent=1 // pred_check
      _
    $region3: #{tpu_custom_call.1} parent=1 // pred_check_branch
      %12 = sbr.rel (0) target = $region5
    $region4: #{tpu_custom_call.1} parent=1 // pred_region
      %s14 = ssub.s32 128, 128
      %15 = vsyncadd [#allocation3], %s14
      %s17 = sshll.u32 [#allocation2], 4
      %s18 = int_to_ptr.vmem [resolvable:$true] %s17
      %20 = dma.hbm_to_vmem [thread:$0]  %s0, 128, %s18, [#allocation3]
    $region5: #{tpu_custom_call.1} parent=1 // pred_fallthru
      _
    // Predicated region
    $region6: #{tpu_custom_call.1} parent=1 // pred_check
      _
    $region7: #{tpu_custom_call.1} parent=1 // pred_check_branch
      %22 = sbr.rel (0) target = $region9
    $region8: #{tpu_custom_call.1} parent=1 // pred_region
      %s24 = ssub.s32 640, 640
      %25 = vsyncadd [#allocation6], %s24
      %s26 = sshll.u32 [#allocation5], 4
      %s27 = int_to_ptr.vmem [resolvable:$true] %s26
      %32 = dma.hbm_to_vmem [thread:$0]  %s1, 640, %s27, [#allocation6], 128, 128, 8
    $region9: #{tpu_custom_call.1} parent=1 // pred_fallthru
      _
    // Predicated region
    $region10: #{tpu_custom_call.1} parent=1 // pred_check
      _
    $region11: #{tpu_custom_call.1} parent=1 // pred_check_branch
      %34 = sbr.rel (0) target = $region13
    $region12: #{tpu_custom_call.1} parent=1 // pred_region
      _
    $region13: #{tpu_custom_call.1} parent=1 // pred_fallthru
      _
    // Predicated region
    $region14: #{tpu_custom_call.1} parent=1 // pred_check
      _
    $region15: #{tpu_custom_call.1} parent=1 // pred_check_branch
      %36 = sbr.rel (0) target = $region17
    $region16: #{tpu_custom_call.1} parent=1 // pred_region
      %37 = dma.done [#allocation3], 128
    $region17: #{tpu_custom_call.1} parent=1 // pred_fallthru
      _
    // Predicated region
    $region18: #{tpu_custom_call.1} parent=1 // pred_check
      _
    $region19: #{tpu_custom_call.1} parent=1 // pred_check_branch
      %39 = sbr.rel (0) target = $region21
    $region20: #{tpu_custom_call.1} parent=1 // pred_region
      %40 = dma.done [#allocation6], 640
    $region21: #{tpu_custom_call.1} parent=1 // pred_fallthru
      _
    %v41 = vld [vmem:[#allocation2] sm:$0xff]
    %v42 = vld [vmem:[#allocation5] sm:$0xff]
    %v43 = vld [vmem:[#allocation5 + $0x8] sm:$0xff]
    %v44 = vld [vmem:[#allocation5 + $0x10] sm:$0xff]
    %v45 = vld [vmem:[#allocation5 + $0x18] sm:$0xff]
    %v46 = vld [vmem:[#allocation5 + $0x20] sm:$0xff]
    %v47 = vld [vmem:[%s2] sm:$0x1]
    %v49 = vlaneseq
    %v50 = vshrl.u32 %v49, 7
    %v51 = vsub.s32 0, %v50
    %v52 = vrot.slane %v47, %v51
    %vm54 = vcmask 326656
    %v56 = vsel %vm54, %v41, 0
    %58 = vmatprep.subr.mxu0 0.0
    %59 = vmatpush1.msra.mxu0 0.0
    %60 = vmatprep.subr.mxu0 0.0
    %61 = vmatpush1.msra.mxu0 0.0
    %62 = vmatprep.subr.mxu0 0.0
    %63 = vmatpush1.msra.mxu0 0.0
    %64 = vmatprep.subr.mxu0 0.0
    %65 = vmatpush1.msra.mxu0 0.0
    %66 = vmatprep.subr.mxu0 0.0
    %67 = vmatpush1.msra.mxu0 0.0
    %68 = vmatprep.subr.mxu0 0.0
    %69 = vmatpush1.msra.mxu0 0.0
    %70 = vmatprep.subr.mxu0 0.0
    %71 = vmatpush1.msra.mxu0 0.0
    %72 = vmatprep.subr.mxu0 0.0
    %73 = vmatpush1.msra.mxu0 0.0
    %74 = vmatprep.subr.mxu0 0.0
    %75 = vmatpush1.msra.mxu0 0.0
    %76 = vmatprep.subr.mxu0 0.0
    %77 = vmatpush1.msra.mxu0 0.0
    %78 = vmatprep.subr.mxu0 0.0
    %79 = vmatpush1.msra.mxu0 0.0
    %80 = vmatprep.subr.mxu0 0.0
    %81 = vmatpush1.msra.mxu0 %v46
    %82 = vmatprep.subr.mxu0 0.0
    %83 = vmatpush1.msra.mxu0 %v45
    %84 = vmatprep.subr.mxu0 0.0
    %85 = vmatpush1.msra.mxu0 %v44
    %86 = vmatprep.subr.mxu0 0.0
    %87 = vmatpush1.msra.mxu0 %v43
    %88 = vmatprep.subr.mxu0 0.0
    %89 = vmatpush1.msra.mxu0 %v42
    %90 = vmatprep.subr.mxu0 0.0
    %91 = vmatpush2.msra.mxu0 0.0
    %92 = vmatprep.subr.mxu0 0.0
    %93 = vmatpush2.msra.mxu0 0.0
    %94 = vmatprep.subr.mxu0 0.0
    %95 = vmatpush2.msra.mxu0 0.0
    %96 = vmatprep.subr.mxu0 0.0
    %97 = vmatpush2.msra.mxu0 0.0
    %98 = vmatprep.subr.mxu0 0.0
    %99 = vmatpush2.msra.mxu0 0.0
    %100 = vmatprep.subr.mxu0 0.0
    %101 = vmatpush2.msra.mxu0 0.0
    %102 = vmatprep.subr.mxu0 0.0
    %103 = vmatpush2.msra.mxu0 0.0
    %104 = vmatprep.subr.mxu0 0.0
    %105 = vmatpush2.msra.mxu0 0.0
    %106 = vmatprep.subr.mxu0 0.0
    %107 = vmatpush2.msra.mxu0 0.0
    %108 = vmatprep.subr.mxu0 0.0
    %109 = vmatpush2.msra.mxu0 0.0
    %110 = vmatprep.subr.mxu0 0.0
    %111 = vmatpush2.msra.mxu0 0.0
    %112 = vmatprep.subr.mxu0 0.0
    %113 = vmatpush2.msra.mxu0 0.0
    %114 = vmatprep.subr.mxu0 0.0
    %115 = vmatpush2.msra.mxu0 0.0
    %116 = vmatprep.subr.mxu0 0.0
    %117 = vmatpush2.msra.mxu0 0.0
    %118 = vmatprep.subr.mxu0 0.0
    %119 = vmatpush2.msra.mxu0 0.0
    %120 = vmatprep.subr.mxu0 0.0
    %121 = vmatpush2.msra.mxu0 0.0
    %122 = vmatprep.mubr.f32.mxu0 0.0
    %123 = vmatmul.mubr.f32.gmra.mxu0 %v56
    %v124 = vpop.f32.mrf.mxu0
    %v125 = vadd.f32 %v52, %v124
    %v126 = vpop.f32.mrf.mxu0
    %127 = vdwg.mxu0
    %128 = vst.msk [vmem:[#allocation7] sm:$0xff] %vm54, %v125
    // Predicated region
    $region22: #{tpu_custom_call.1} parent=1 // pred_check
      _
    $region23: #{tpu_custom_call.1} parent=1 // pred_check_branch
      %130 = sbr.rel (0) target = $region25
    $region24: #{tpu_custom_call.1} parent=1 // pred_region
      %s132 = ssub.s32 128, 128
      %133 = vsyncadd [#allocation4], %s132
      %s135 = sshll.u32 [#allocation7], 4
      %s136 = int_to_ptr.vmem [resolvable:$true] %s135
      %138 = dma.vmem_to_hbm [thread:$0]  %s136, 128, %s3, [#allocation4]
    $region25: #{tpu_custom_call.1} parent=1 // pred_fallthru
      _
    // Predicated region
    $region26: #{tpu_custom_call.1} parent=1 // pred_check
      _
    $region27: #{tpu_custom_call.1} parent=1 // pred_check_branch
      %140 = sbr.rel (0) target = $region29
    $region28: #{tpu_custom_call.1} parent=1 // pred_region
      %141 = dma.done [#allocation4], 128
    $region29: #{tpu_custom_call.1} parent=1 // pred_fallthru
      _
    %142 = vsyncpa [#allocation3], 1
    %143 = vsyncpa [#allocation6], 1
    %144 = vsyncpa [#allocation4], 1

</llo_original>
